<compile_context>
chip_gen: v6e
topology: v6e:2x2x1
jax: 0.10.0
libtpu: 0.0.40
codegen_flags: <defaults>
</compile_context>

<pallas_src>
import functools
import math

import jax
import jax.numpy as jnp
from jax.experimental import pallas as pl
from jax.experimental.pallas import tpu as pltpu

D, H = 16, 32                # feature dim, hidden / time-embedding dim
HALF = H // 2
TB = 8                       # batch-row tile (one sublane group) per grid step

# Lane-dense (48, 128) weight-slab layout (f32):
#   lanes [0,   H):  rows [0, D)      -> W1   (D, H)
#                    rows [D, D+H)    -> Wt   (H, H)
#   lanes [H,  2H):  rows [0, D)      -> W2^T (D, H)
#   lanes [2H, 3H):  row 0 -> b1, row 1 -> freqs, row 2 -> phase   (each (1,H))
#   lanes [3H, 3H+D): row 0 -> b2 (1, D)
SLAB_ROWS = D + H            # 48
SLAB_LANES = 128
LANE_W1 = 0
LANE_W2T = H
LANE_MISC = 2 * H
LANE_B2 = 3 * H

_TWO_PI = 2.0 * math.pi
_INV_TWO_PI = 1.0 / _TWO_PI


def ddim_loss_kernel(x_ref, noise_ref, t_ref, slab_ref, out_ref, *, inv_n):
    """One 8-row tile: temb -> MLP denoiser -> accumulate mean |pred - noise|.

    x_ref:     (TB, D)  f32   noisy images tile
    noise_ref: (TB, D)  f32   target noise tile
    t_ref:     (TB, 1)  i32   timesteps tile (cast to f32 in-kernel)
    slab_ref:  (48,128) f32   packed weights / biases / sinusoid constants
    out_ref:   (1, 1)   f32   SMEM scalar, accumulated across the batch grid
    """
    step = pl.program_id(0)

    @pl.when(step == 0)
    def _():
        out_ref[0, 0] = 0.0

    # Sinusoidal timestep embedding as a single cos:
    #   temb = cos(t * freqs + phase),  phase = 0 (cos half) / -pi/2 (sin half)
    # freqs/phase are compile-time constants baked into the slab.
    t = t_ref[...].astype(jnp.float32)                       # (TB, 1)
    freqs = slab_ref[1:2, LANE_MISC:LANE_MISC + H]           # (1, H)
    phase = slab_ref[2:3, LANE_MISC:LANE_MISC + H]           # (1, H)
    args = t * freqs + phase                                 # (TB, H)
    # Cheap mod-2pi range reduction keeps the EUP cos well-conditioned for
    # phases up to ~1e3 rad (timesteps up to 1000, top frequency = 1).
    args = args - _TWO_PI * jnp.floor(args * _INV_TWO_PI)
    temb = jnp.cos(args)                                     # (TB, H)

    # Layer 1: two MXU dots (no activation concat needed) + SiLU.
    x = x_ref[...]                                           # (TB, D)
    w1 = slab_ref[0:D, LANE_W1:LANE_W1 + H]                  # (D, H)
    wt = slab_ref[D:D + H, LANE_W1:LANE_W1 + H]              # (H, H)
    b1 = slab_ref[0:1, LANE_MISC:LANE_MISC + H]              # (1, H)
    h = (jnp.dot(x, w1, preferred_element_type=jnp.float32)
         + jnp.dot(temb, wt, preferred_element_type=jnp.float32)
         + b1)
    h = h * jax.nn.sigmoid(h)                                # SiLU

    # Layer 2: W2 stored transposed -> contract the last axes on the MXU.
    w2t = slab_ref[0:D, LANE_W2T:LANE_W2T + H]               # (D, H) = W2^T
    b2 = slab_ref[0:1, LANE_B2:LANE_B2 + D]                  # (1, D)
    pred = jax.lax.dot_general(
        h, w2t, (((1,), (1,)), ((), ())),
        preferred_element_type=jnp.float32) + b2             # (TB, D)

    # Partial L1 sum, pre-scaled by 1/(N*D) so no finalize step is needed.
    out_ref[0, 0] += jnp.sum(jnp.abs(pred - noise_ref[...])) * inv_n


def pack_params(params):
    """One-time packing of denoiser weights + sinusoid constants into a slab."""
    w1, wt, b1, w2, b2 = params
    j = jnp.arange(HALF, dtype=jnp.float32)
    f = jnp.exp(j * (-math.log(10000.0) / HALF))
    freqs = jnp.concatenate([f, f])                                  # (H,)
    phase = jnp.concatenate([jnp.zeros((HALF,), jnp.float32),
                             jnp.full((HALF,), -math.pi / 2, jnp.float32)])

    slab = jnp.zeros((SLAB_ROWS, SLAB_LANES), jnp.float32)
    slab = slab.at[0:D, LANE_W1:LANE_W1 + H].set(w1)
    slab = slab.at[D:D + H, LANE_W1:LANE_W1 + H].set(wt)
    slab = slab.at[0:D, LANE_W2T:LANE_W2T + H].set(w2.T)
    slab = slab.at[0:1, LANE_MISC:LANE_MISC + H].set(b1.reshape(1, H))
    slab = slab.at[1:2, LANE_MISC:LANE_MISC + H].set(freqs.reshape(1, H))
    slab = slab.at[2:3, LANE_MISC:LANE_MISC + H].set(phase.reshape(1, H))
    slab = slab.at[0:1, LANE_B2:LANE_B2 + D].set(b2.reshape(1, D))
    return slab


@jax.jit
def ddim_model_forward(noise, noisy_images, timesteps, slab):
    """Equivalent of DDIMModel.forward -> scalar L1 loss.

    Supports any batch N (multiple of TB); the leading grid axis processes
    TB-row tiles per step and accumulates the loss in-kernel, amortizing the
    fixed per-pallas_call cost over the whole batch.
    """
    N, d = noisy_images.shape
    assert d == D and noise.shape == (N, D) and timesteps.shape[0] == N
    assert N % TB == 0  # TODO(synk): mask a ragged last tile if ever needed
    grid = (N // TB,)
    inv_n = 1.0 / (N * D)
    t2d = timesteps.reshape(N, 1)            # int32; f32 cast done in-kernel

    cost = pl.CostEstimate(
        flops=2 * N * (D * H + H * H + H * D),
        transcendentals=2 * N * H,           # cos + sigmoid
        bytes_accessed=4 * (2 * N * D + N + SLAB_ROWS * SLAB_LANES + 1),
    )

    loss = pl.pallas_call(
        functools.partial(ddim_loss_kernel, inv_n=inv_n),
        out_shape=jax.ShapeDtypeStruct((1, 1), jnp.float32),
        grid=grid,
        in_specs=[
            pl.BlockSpec((TB, D), lambda i: (i, 0)),                 # noisy x
            pl.BlockSpec((TB, D), lambda i: (i, 0)),                 # noise
            pl.BlockSpec((TB, 1), lambda i: (i, 0)),                 # timesteps
            pl.BlockSpec((SLAB_ROWS, SLAB_LANES), lambda i: (0, 0)),  # weights
        ],
        out_specs=pl.BlockSpec((1, 1), lambda i: (0, 0),
                               memory_space=pltpu.MemorySpace.SMEM),
        compiler_params=pltpu.CompilerParams(
            dimension_semantics=("arbitrary",)),   # loss accumulation axis
        cost_estimate=cost,
    )(noisy_images, noise, t2d, slab)

    # F.l1_loss(reduction='mean') is already a scalar; .mean(-1).mean() no-op.
    return loss[0, 0]


# ------------------------- pure-JAX reference -------------------------------

def timestep_embedding(timesteps, dim):
    half = dim // 2
    freqs = jnp.exp(jnp.arange(half, dtype=jnp.float32)
                    * (-math.log(10000.0) / half))
    args = timesteps.astype(jnp.float32)[:, None] * freqs[None, :]
    return jnp.concatenate([jnp.cos(args), jnp.sin(args)], axis=-1)  # (N, H)


def noise_fn_reference(x, timesteps, params):
    w1, wt, b1, w2, b2 = params
    temb = timestep_embedding(timesteps, H)
    h = x @ w1 + temb @ wt + b1
    h = h * jax.nn.sigmoid(h)
    return h @ w2 + b2


def ddim_loss_reference(noise, noisy_images, timesteps, params):
    pred = noise_fn_reference(noisy_images, timesteps, params)
    return jnp.mean(jnp.abs(pred - noise))


if __name__ == "__main__":
    key = jax.random.PRNGKey(0)
    (k_noise, k_img, k_t, k_w1, k_wt, k_b1, k_w2, k_b2,
     k_noise2, k_img2, k_t2) = jax.random.split(key, 11)

    # Deterministic synthetic parameters for noise_fn (MLP denoiser).
    w1 = jax.random.normal(k_w1, (D, H), dtype=jnp.float32) / math.sqrt(D)
    wt = jax.random.normal(k_wt, (H, H), dtype=jnp.float32) / math.sqrt(H)
    b1 = jax.random.normal(k_b1, (1, H), dtype=jnp.float32) * 0.01
    w2 = jax.random.normal(k_w2, (H, D), dtype=jnp.float32) / math.sqrt(H)
    b2 = jax.random.normal(k_b2, (1, D), dtype=jnp.float32) * 0.01
    params = (w1, wt, b1, w2, b2)
    slab = pack_params(params)   # one-time weight packing (static across steps)

    # Case 1: module-sized problem (B=8) -> single grid step.
    noise = jax.random.normal(k_noise, (8, D), dtype=jnp.float32)
    noisy_images = jax.random.normal(k_img, (8, D), dtype=jnp.float32)
    timesteps = jax.random.randint(k_t, (8,), 0, 1000, dtype=jnp.int32)

    loss = ddim_model_forward(noise, noisy_images, timesteps, slab)
    jax.block_until_ready(loss)

    # Check 1 (tight): timesteps == 0 makes the sinusoid path exact
    # (cos(0)=1, sin(0)=0), isolating packing / matmuls / reduction.
    t0 = jnp.zeros((8,), jnp.int32)
    loss0 = ddim_model_forward(noise, noisy_images, t0, slab)
    loss0_ref = ddim_loss_reference(noise, noisy_images, t0, params)
    assert jnp.allclose(loss0, loss0_ref, atol=1e-4, rtol=1e-4), (loss0, loss0_ref)

    # Check 2 (full path, B=8): phases reach ~1e3 rad; the in-kernel mod-2pi
    # reduction bounds the cos error at ~1e-4 -> loose scalar tolerance.
    loss_ref = ddim_loss_reference(noise, noisy_images, timesteps, params)
    assert jnp.allclose(loss, loss_ref, atol=1e-3, rtol=1e-3), (loss, loss_ref)

    # Check 3: larger batch (N=64) exercising the grid-accumulation path that
    # amortizes per-call overhead across 8 row tiles.
    noise64 = jax.random.normal(k_noise2, (64, D), dtype=jnp.float32)
    noisy64 = jax.random.normal(k_img2, (64, D), dtype=jnp.float32)
    t64 = jax.random.randint(k_t2, (64,), 0, 1000, dtype=jnp.int32)
    loss64 = ddim_model_forward(noise64, noisy64, t64, slab)
    loss64_ref = ddim_loss_reference(noise64, noisy64, t64, params)
    assert jnp.allclose(loss64, loss64_ref, atol=1e-3, rtol=1e-3), (loss64, loss64_ref)

    print("KERNEL_OK")
</pallas_src>

<mosaic_0001>
module attributes {stable_mosaic.version = 11 : i64} {
  func.func @ddim_loss_kernel(%arg0: i32, %arg1: memref<8x16xf32, #tpu.memory_space<vmem>>, %arg2: memref<8x16xf32, #tpu.memory_space<vmem>>, %arg3: memref<8x1xi32, #tpu.memory_space<vmem>>, %arg4: memref<48x128xf32, #tpu.memory_space<vmem>>, %arg5: memref<1x1xf32, #tpu.memory_space<smem>>) attributes {dimension_semantics = [#tpu.dimension_semantics<arbitrary>], iteration_bounds = array<i64: 1>, scalar_prefetch = 0 : i64, scratch_operands = 0 : i64, tpu.core_type = #tpu.core_type<tc>, window_params = [{transform_indices = @transform_0, window_bounds = array<i64: 8, 16>}, {transform_indices = @transform_1, window_bounds = array<i64: 8, 16>}, {transform_indices = @transform_2, window_bounds = array<i64: 8, 1>}, {pipeline_mode = #tpu.pipeline_mode<synchronous>, transform_indices = @transform_3, window_bounds = array<i64: 48, 128>}, {transform_indices = @transform_4, window_bounds = array<i64: 1, 1>}]} {
    %c0_i32 = arith.constant 0 : i32
    %0 = arith.cmpi eq, %arg0, %c0_i32 : i32
    %1 = arith.extui %0 : i1 to i32
    %c0_i32_0 = arith.constant 0 : i32
    %2 = arith.cmpi ne, %1, %c0_i32_0 : i32
    scf.if %2 {
      %cst_25 = arith.constant 0.000000e+00 : f32
      %c0_26 = arith.constant 0 : index
      %c0_27 = arith.constant 0 : index
      %50 = memref.load %arg5[%c0_26, %c0_27] : memref<1x1xf32, #tpu.memory_space<smem>>
      memref.store %cst_25, %arg5[%c0_26, %c0_27] : memref<1x1xf32, #tpu.memory_space<smem>>
    } else {
    }
    %c0 = arith.constant 0 : index
    %c0_1 = arith.constant 0 : index
    %3 = vector.load %arg3[%c0, %c0_1] : memref<8x1xi32, #tpu.memory_space<vmem>>, vector<8x1xi32>
    %4 = arith.sitofp %3 : vector<8x1xi32> to vector<8x1xf32>
    %c1 = arith.constant 1 : index
    %c64 = arith.constant 64 : index
    %5 = vector.load %arg4[%c1, %c64] : memref<48x128xf32, #tpu.memory_space<vmem>>, vector<1x32xf32>
    %c2 = arith.constant 2 : index
    %c64_2 = arith.constant 64 : index
    %6 = vector.load %arg4[%c2, %c64_2] : memref<48x128xf32, #tpu.memory_space<vmem>>, vector<1x32xf32>
    %7 = vector.broadcast %4 : vector<8x1xf32> to vector<8x32xf32>
    %8 = vector.broadcast %5 : vector<1x32xf32> to vector<8x32xf32>
    %9 = arith.mulf %7, %8 : vector<8x32xf32>
    %10 = vector.broadcast %6 : vector<1x32xf32> to vector<8x32xf32>
    %11 = arith.addf %9, %10 : vector<8x32xf32>
    %cst = arith.constant 0.159154937 : f32
    %12 = vector.broadcast %cst : f32 to vector<8x32xf32>
    %13 = arith.mulf %11, %12 : vector<8x32xf32>
    %14 = math.floor %13 : vector<8x32xf32>
    %cst_3 = arith.constant 6.28318548 : f32
    %15 = vector.broadcast %cst_3 : f32 to vector<8x32xf32>
    %16 = arith.mulf %15, %14 : vector<8x32xf32>
    %17 = arith.subf %11, %16 : vector<8x32xf32>
    %18 = math.cos %17 : vector<8x32xf32>
    %c0_4 = arith.constant 0 : index
    %c0_5 = arith.constant 0 : index
    %19 = vector.load %arg1[%c0_4, %c0_5] : memref<8x16xf32, #tpu.memory_space<vmem>>, vector<8x16xf32>
    %c0_6 = arith.constant 0 : index
    %c0_7 = arith.constant 0 : index
    %20 = vector.load %arg4[%c0_6, %c0_7] : memref<48x128xf32, #tpu.memory_space<vmem>>, vector<16x32xf32>
    %c16 = arith.constant 16 : index
    %c0_8 = arith.constant 0 : index
    %21 = vector.load %arg4[%c16, %c0_8] : memref<48x128xf32, #tpu.memory_space<vmem>>, vector<32x32xf32>
    %c0_9 = arith.constant 0 : index
    %c64_10 = arith.constant 64 : index
    %22 = vector.load %arg4[%c0_9, %c64_10] : memref<48x128xf32, #tpu.memory_space<vmem>>, vector<1x32xf32>
    %cst_11 = arith.constant dense<0.000000e+00> : vector<8x32xf32>
    %23 = tpu.matmul %19, %20, %cst_11 {dimension_numbers = #tpu.dot_dimension_numbers<[1], [0], [0], [1], [0, 0, 1, 1], [], []>} : vector<8x16xf32>, vector<16x32xf32>, vector<8x32xf32> -> vector<8x32xf32>
    %cst_12 = arith.constant dense<0.000000e+00> : vector<8x32xf32>
    %24 = tpu.matmul %18, %21, %cst_12 {dimension_numbers = #tpu.dot_dimension_numbers<[1], [0], [0], [1], [0, 0, 1, 1], [], []>} : vector<8x32xf32>, vector<32x32xf32>, vector<8x32xf32> -> vector<8x32xf32>
    %25 = arith.addf %23, %24 : vector<8x32xf32>
    %26 = vector.broadcast %22 : vector<1x32xf32> to vector<8x32xf32>
    %27 = arith.addf %25, %26 : vector<8x32xf32>
    %28 = arith.negf %27 : vector<8x32xf32>
    %29 = math.exp %28 : vector<8x32xf32>
    %cst_13 = arith.constant 1.000000e+00 : f32
    %30 = vector.broadcast %cst_13 : f32 to vector<8x32xf32>
    %31 = arith.addf %30, %29 : vector<8x32xf32>
    %32 = arith.divf %30, %31 : vector<8x32xf32>
    %33 = arith.mulf %27, %32 : vector<8x32xf32>
    %c0_14 = arith.constant 0 : index
    %c32 = arith.constant 32 : index
    %34 = vector.load %arg4[%c0_14, %c32] : memref<48x128xf32, #tpu.memory_space<vmem>>, vector<16x32xf32>
    %c0_15 = arith.constant 0 : index
    %c96 = arith.constant 96 : index
    %35 = vector.load %arg4[%c0_15, %c96] : memref<48x128xf32, #tpu.memory_space<vmem>>, vector<1x16xf32>
    %cst_16 = arith.constant dense<0.000000e+00> : vector<8x16xf32>
    %36 = tpu.matmul %33, %34, %cst_16 {dimension_numbers = #tpu.dot_dimension_numbers<[1], [1], [0], [0], [0, 0, 1, 0], [], []>} : vector<8x32xf32>, vector<16x32xf32>, vector<8x16xf32> -> vector<8x16xf32>
    %37 = vector.broadcast %35 : vector<1x16xf32> to vector<8x16xf32>
    %38 = arith.addf %36, %37 : vector<8x16xf32>
    %c0_17 = arith.constant 0 : index
    %c0_18 = arith.constant 0 : index
    %39 = memref.load %arg5[%c0_17, %c0_18] : memref<1x1xf32, #tpu.memory_space<smem>>
    %c0_19 = arith.constant 0 : index
    %c0_20 = arith.constant 0 : index
    %40 = vector.load %arg2[%c0_19, %c0_20] : memref<8x16xf32, #tpu.memory_space<vmem>>, vector<8x16xf32>
    %41 = arith.subf %38, %40 : vector<8x16xf32>
    %42 = math.absf %41 : vector<8x16xf32>
    %43 = vector.shape_cast %42 : vector<8x16xf32> to vector<1x8x16xf32>
    %cst_21 = arith.constant dense<0.000000e+00> : vector<1xf32>
    %44 = vector.multi_reduction <add>, %43, %cst_21 [1, 2] : vector<1x8x16xf32> to vector<1xf32>
    %45 = vector.shape_cast %44 : vector<1xf32> to vector<1x1x1xf32>
    %46 = vector.extract %45[0, 0, 0] : f32 from vector<1x1x1xf32>
    %cst_22 = arith.constant 7.812500e-03 : f32
    %47 = arith.mulf %46, %cst_22 : f32
    %48 = arith.addf %39, %47 : f32
    %c0_23 = arith.constant 0 : index
    %c0_24 = arith.constant 0 : index
    %49 = memref.load %arg5[%c0_23, %c0_24] : memref<1x1xf32, #tpu.memory_space<smem>>
    memref.store %48, %arg5[%c0_23, %c0_24] : memref<1x1xf32, #tpu.memory_space<smem>>
    return
  }
  func.func @transform_0(%arg0: i32) -> (i32, i32) {
    %c0_i32 = arith.constant 0 : i32
    %c0_i32_0 = arith.constant 0 : i32
    return %arg0, %c0_i32 : i32, i32
  }
  func.func @transform_1(%arg0: i32) -> (i32, i32) {
    %c0_i32 = arith.constant 0 : i32
    %c0_i32_0 = arith.constant 0 : i32
    return %arg0, %c0_i32 : i32, i32
  }
  func.func @transform_2(%arg0: i32) -> (i32, i32) {
    %c0_i32 = arith.constant 0 : i32
    %c0_i32_0 = arith.constant 0 : i32
    return %arg0, %c0_i32 : i32, i32
  }
  func.func @transform_3(%arg0: i32) -> (i32, i32) {
    %c0_i32 = arith.constant 0 : i32
    %c0_i32_0 = arith.constant 0 : i32
    %c0_i32_1 = arith.constant 0 : i32
    return %c0_i32, %c0_i32_0 : i32, i32
  }
  func.func @transform_4(%arg0: i32) -> (i32, i32) {
    %c0_i32 = arith.constant 0 : i32
    %c0_i32_0 = arith.constant 0 : i32
    %c0_i32_1 = arith.constant 0 : i32
    return %c0_i32, %c0_i32_0 : i32, i32
  }
}

</mosaic_0001>

<llo_original>
// kernel: ddim_model_forward.1
$region0: #{ddim_model_forward.1}
  #allocation0 [shape = 'u32[]', space=smem, size = 0x4, offset = 0x4, fixed_abs, tag = 'smem constant byte address 0x4 - core index']
  #allocation1 [shape = 'u32[144,128]{1,0:T(1,128)}', space=vmem, size = 0x12000, scoped, tag = 'internal scratch']
  %s0 = inlined_call_operand.vmem [shape: f32[8,16], index: 0, kind: input, shape index: {}]
  %s1 = inlined_call_operand.hbm [shape: f32[8,16], index: 1, kind: input, shape index: {}]
  %s2 = inlined_call_operand.vmem [shape: s32[8,1], index: 2, kind: input, shape index: {}]
  %s3 = inlined_call_operand.hbm [shape: f32[48,128], index: 3, kind: input, shape index: {}]
  %s4 = inlined_call_operand.hbm [shape: f32[1,1], index: 4, kind: output, shape index: {}]
  %s5 = sld [smem:[#allocation0]]
  $region38: #{ddim_model_forward.1} parent=0
    _
  %s7 = ssub.s32 1, %s5
  %s8 = scalar_select 0, %s7, %s5
  $region1: #{ddim_model_forward.1} parent=0
    #allocation2 [shape = 'u8[4096]{0}', space=vmem, size = 0x1000, scoped, tag = 'input window, operand 1, single buffered']
    #allocation3 [shape = 's32[1]{0}', space=sflag, size = 0x4, scoped, tag = 'scoped memory for ddim_model_forward.1']
    #allocation4 [shape = 's32[1]{0}', space=sflag, size = 0x4, scoped, tag = 'scoped memory for ddim_model_forward.1']
    #allocation5 [shape = 'u8[24576]{0}', space=vmem, size = 0x6000, scoped, tag = 'input window, operand 3, single buffered']
    #allocation6 [shape = 's32[1]{0}', space=sflag, size = 0x4, scoped, tag = 'scoped memory for ddim_model_forward.1']
    #allocation7 [shape = 'u8[512]{0}', space=smem, size = 0x200, scoped, tag = 'output window, operand 0, single buffered']
    %9 = vsyncpa [#allocation3], 0
    %10 = vsyncpa [#allocation6], 0
    %11 = vsyncpa [#allocation4], 0
    // Predicated region
    $region2: #{ddim_model_forward.1} parent=1 // pred_check
      _
    $region3: #{ddim_model_forward.1} parent=1 // pred_check_branch
      %13 = sbr.rel (0) target = $region5
    $region4: #{ddim_model_forward.1} parent=1 // pred_region
      _
    $region5: #{ddim_model_forward.1} parent=1 // pred_fallthru
      _
    // Predicated region
    $region6: #{ddim_model_forward.1} parent=1 // pred_check
      _
    $region7: #{ddim_model_forward.1} parent=1 // pred_check_branch
      %15 = sbr.rel (0) target = $region9
    $region8: #{ddim_model_forward.1} parent=1 // pred_region
      %s17 = ssub.s32 128, 128
      %18 = vsyncadd [#allocation3], %s17
      %s20 = sshll.u32 [#allocation2], 4
      %s21 = int_to_ptr.vmem [resolvable:$true] %s20
      %23 = dma.hbm_to_vmem [thread:$0]  %s1, 128, %s21, [#allocation3]
    $region9: #{ddim_model_forward.1} parent=1 // pred_fallthru
      _
    // Predicated region
    $region10: #{ddim_model_forward.1} parent=1 // pred_check
      _
    $region11: #{ddim_model_forward.1} parent=1 // pred_check_branch
      %25 = sbr.rel (0) target = $region13
    $region12: #{ddim_model_forward.1} parent=1 // pred_region
      _
    $region13: #{ddim_model_forward.1} parent=1 // pred_fallthru
      _
    // Predicated region
    $region14: #{ddim_model_forward.1} parent=1 // pred_check
      _
    $region15: #{ddim_model_forward.1} parent=1 // pred_check_branch
      %27 = sbr.rel (0) target = $region17
    $region16: #{ddim_model_forward.1} parent=1 // pred_region
      %s29 = ssub.s32 768, 768
      %30 = vsyncadd [#allocation6], %s29
      %s31 = sshll.u32 [#allocation5], 4
      %s32 = int_to_ptr.vmem [resolvable:$true] %s31
      %37 = dma.hbm_to_vmem [thread:$0]  %s3, 768, %s32, [#allocation6], 128, 128, 8
    $region17: #{ddim_model_forward.1} parent=1 // pred_fallthru
      _
    // Predicated region
    $region18: #{ddim_model_forward.1} parent=1 // pred_check
      _
    $region19: #{ddim_model_forward.1} parent=1 // pred_check_branch
      %39 = sbr.rel (0) target = $region21
    $region20: #{ddim_model_forward.1} parent=1 // pred_region
      %40 = dma.done [#allocation3], 128
    $region21: #{ddim_model_forward.1} parent=1 // pred_fallthru
      _
    // Predicated region
    $region22: #{ddim_model_forward.1} parent=1 // pred_check
      _
    $region23: #{ddim_model_forward.1} parent=1 // pred_check_branch
      %42 = sbr.rel (0) target = $region25
    $region24: #{ddim_model_forward.1} parent=1 // pred_region
      %43 = dma.done [#allocation6], 768
    $region25: #{ddim_model_forward.1} parent=1 // pred_fallthru
      _
    %p44 = scmp.eq.s32.totalorder 0, 0
    // Predicated region
    $region26: #{ddim_model_forward.1} parent=1 // pred_check
      %p45 = pneg %p44
    $region27: #{ddim_model_forward.1} parent=1 // pred_check_branch
      %47 = sbr.rel (%p45) target = $region29
    $region28: #{ddim_model_forward.1} parent=1 // pred_region
      %s48 = scalar_lea.smem [#allocation7], 0
      %49 = sst [smem:[%s48]] 0.0
    $region29: #{ddim_model_forward.1} parent=1 // pred_fallthru
      _
    %v50 = vld [vmem:[%s2] sm:$0xff]
    %v51 = vcvt.s32.f32 %v50
    %v52 = vld [vmem:[#allocation5 + $0x1] sm:$0x1]
    %v53 = vld [vmem:[#allocation5 + $0x2] sm:$0x1]
    %55 = vset.pattern.permute.xlu0 0
    %56 = vperm.xlu0 %55, %v51
    %v57 = vpop.permute.xlu0 %56
    %v59 = vlaneseq
    %v60 = vshrl.u32 %v59, 7
    %v61 = vsub.s32 0, %v60
    %v62 = vrot.slane %v52, %v61
    %v63 = vmul.f32 %v57, %v62
    %v64 = vlaneseq
    %v65 = vshrl.u32 %v64, 7
    %v66 = vsub.s32 0, %v65
    %v67 = vrot.slane %v53, %v66
    %v68 = vadd.f32 %v63, %v67
    %v69 = vmul.f32 %v68, 0.15915494
    %v70 = vfloor.f32 %v69
    %v71 = vmul.f32 %v70, 6.2831855
    %v72 = vsub.f32 %v68, %v71
    %v73 = vand.u32 2147483647, %v72
    %vm74 = vcmp.le.f32.partialorder %v73, 0.7853982
    %vm75 = vcmp.lt.s32.totalorder %v72, 0
    %v76 = vand.u32 %v72, 2139095040
    %v77 = vshrl.u32 %v76, 23
    %v78 = vsub.s32 %v77, 127
    %v79 = vand.u32 2147483647, %v72
    %v80 = vand.u32 %v79, 8388607
    %v81 = vor.u32 %v80, 8388608
    %v82 = vsub.s32 0, %v81
    %v83 = vadd.s32 %v78, 1
    %vm84 = vcmp.gt.s32.totalorder %v83, 0
    %v85 = vsel %vm84, %v83, 0
    %v86 = vshrl.u32 %v85, 5
    %v87 = vand.u32 %v85, 31
    %v88 = vsub.s32 32, %v87
    %v89 = vshrl.u32 683565275, %v88
    %v90 = vshll.u32 683565275, %v87
    %v91 = vshrl.u32 2475754826, %v88
    %v92 = vor.u32 %v90, %v91
    %v93 = vshll.u32 2475754826, %v87
    %v94 = vshrl.u32 2131351028, %v88
    %v95 = vor.u32 %v93, %v94
    %v96 = vshll.u32 2131351028, %v87
    %v97 = vshrl.u32 2102212464, %v88
    %v98 = vor.u32 %v96, %v97
    %v99 = vshll.u32 2102212464, %v87
    %v100 = vshrl.u32 920167782, %v88
    %v101 = vor.u32 %v99, %v100
    %v102 = vshll.u32 920167782, %v87
    %v103 = vshrl.u32 1326507024, %v88
    %v104 = vor.u32 %v102, %v103
    %vm105 = vcmp.lt.s32.totalorder %v86, 1
    %vm106 = vcmp.lt.s32.totalorder %v86, 2
    %vm107 = vcmp.lt.s32.totalorder %v86, 3
    %vm108 = vcmp.lt.s32.totalorder %v86, 4
    %v109 = vsel %vm105, %v89, %v92
    %v110 = vsel %vm108, %v98, 2102212464
    %v111 = vsel %vm107, %v95, %v110
    %v112 = vsel %vm106, %v109, %v111
    %v113 = vsel %vm105, %v92, %v95
    %v114 = vsel %vm108, %v101, 920167782
    %v115 = vsel %vm107, %v98, %v114
    %v116 = vsel %vm106, %v113, %v115
    %v117 = vsel %vm105, %v95, %v98
    %v118 = vsel %vm108, %v104, 1326507024
    %v119 = vsel %vm107, %v101, %v118
    %v120 = vsel %vm106, %v117, %v119
    %v121 = vshll.u32 %v81, 8
    %v122 = vmul.u32.u64.compose %v121, %v120
    %v123 = vextract.low.u32 %v122
    %v124 = vextract.high.u32 %v122
    %v125 = vmul.u32.u64.compose %v121, %v116
    %v126 = vextract.low.u32 %v125
    %v127 = vextract.high.u32 %v125
    %v128 = vmul.u32 %v121, %v112
    %v129 = vadd.s32 %v124, %v126
    %vm130 = vc.u32 %v124, %v126
    %v131 = vadd.s32 %v127, 1
    %v132 = vsel %vm130, %v131, %v127
    %v133 = vadd.s32 %v128, %v132
    %v134 = vadd.s32 %v133, 536870912
    %v135 = vshrl.u32 %v134, 30
    %v136 = vshll.u32 %v135, 30
    %v137 = vsub.s32 %v133, %v136
    %vm138 = vcmp.lt.s32.totalorder %v137, 0
    %v139 = vsub.s32 0, %v137
    %v140 = vsel %vm138, %v139, %v137
    %v141 = vclz %v140
    %v142 = vsub.s32 %v141, 2
    %vm143 = vcmp.gt.s32.totalorder 0, %v142
    %v144 = vsel %vm143, 0, %v142
    %v145 = vsub.s32 32, %v144
    %v146 = vshll.u32 %v137, %v144
    %v147 = vshrl.u32 %v129, %v145
    %v148 = vor.u32 %v146, %v147
    %v149 = vsub.s32 4294967266, %v144
    %v150 = vadd.s32 %v149, 127
    %v151 = vshll.u32 %v150, 23
    %v152 = vor.u32 4788187, %v151
    %v153 = vand.u32 2147483647, %v152
    %v155 = vcvt.s32.f32 %v148
    %v156 = vmul.f32 %v155, %v153
    %v157 = vxor.u32 %v156, 2147483648
    %v158 = vsel %vm75, %v157, %v156
    %v159 = vsub.s32 4, %v135
    %v160 = vsel %vm75, %v159, %v135
    %v161 = vsel %vm74, %v72, %v158
    %v162 = vsel %vm74, 0, %v160
    %v163 = vcosq.f32.pop %v161
    %v164 = vsinq.f32.pop %v161
    %vm165 = vweird.f32 %v72
    %v166 = vand.u32 %v162, 3
    %vm167 = vcmp.lt.s32.totalorder %v166, 2
    %vm168 = vcmp.eq.s32.totalorder %v166, 0
    %v169 = vxor.u32 %v164, 2147483648
    %v170 = vsel %vm168, %v163, %v169
    %vm171 = vcmp.eq.s32.totalorder %v166, 2
    %v172 = vxor.u32 %v163, 2147483648
    %v173 = vsel %vm171, %v172, %v164
    %v174 = vsel %vm167, %v170, %v173
    %v175 = vsel %vm165, nan, %v174
    %v176 = vld [vmem:[%s0] sm:$0xff]
    %v177 = vld [vmem:[#allocation5] sm:$0xff]
    %v178 = vld [vmem:[#allocation5 + $0x8] sm:$0xff]
    %v179 = vld [vmem:[#allocation5 + $0x10] sm:$0xff]
    %v180 = vld [vmem:[#allocation5 + $0x18] sm:$0xff]
    %v181 = vld [vmem:[#allocation5 + $0x20] sm:$0xff]
    %v182 = vld [vmem:[#allocation5 + $0x28] sm:$0xff]
    %v183 = vld [vmem:[#allocation5] sm:$0x1]
    %185 = vrot.lane.b32.xlu0 %v175, 64
    %v186 = vpop.permute.xlu0 %185
    %vm187 = vcmask 261120
    %v188 = vsel %vm187, %v186, 0
    %190 = vmatprep.subr.mxu0 0.0
    %191 = vmatpush1.msra.mxu0 0.0
    %192 = vmatprep.subr.mxu0 0.0
    %193 = vmatpush1.msra.mxu0 0.0
    %194 = vmatprep.subr.mxu0 0.0
    %195 = vmatpush1.msra.mxu0 0.0
    %196 = vmatprep.subr.mxu0 0.0
    %197 = vmatpush1.msra.mxu0 0.0
    %198 = vmatprep.subr.mxu0 0.0
    %199 = vmatpush1.msra.mxu0 0.0
    %200 = vmatprep.subr.mxu0 0.0
    %201 = vmatpush1.msra.mxu0 0.0
    %202 = vmatprep.subr.mxu0 0.0
    %203 = vmatpush1.msra.mxu0 0.0
    %204 = vmatprep.subr.mxu0 0.0
    %205 = vmatpush1.msra.mxu0 0.0
    %206 = vmatprep.subr.mxu0 0.0
    %207 = vmatpush1.msra.mxu0 0.0
    %208 = vmatprep.subr.mxu0 0.0
    %209 = vmatpush1.msra.mxu0 0.0
    %210 = vmatprep.subr.mxu0 0.0
    %211 = vmatpush1.msra.mxu0 0.0
    %212 = vmatprep.subr.mxu0 0.0
    %213 = vmatpush1.msra.mxu0 0.0
    %214 = vmatprep.subr.mxu0 0.0
    %215 = vmatpush1.msra.mxu0 %v182
    %216 = vmatprep.subr.mxu0 0.0
    %217 = vmatpush1.msra.mxu0 %v181
    %218 = vmatprep.subr.mxu0 0.0
    %219 = vmatpush1.msra.mxu0 %v180
    %220 = vmatprep.subr.mxu0 0.0
    %221 = vmatpush1.msra.mxu0 %v179
    %222 = vmatprep.subr.mxu0 0.0
    %223 = vmatpush2.msra.mxu0 0.0
    %224 = vmatprep.subr.mxu0 0.0
    %225 = vmatpush2.msra.mxu0 0.0
    %226 = vmatprep.subr.mxu0 0.0
    %227 = vmatpush2.msra.mxu0 0.0
    %228 = vmatprep.subr.mxu0 0.0
    %229 = vmatpush2.msra.mxu0 0.0
    %230 = vmatprep.subr.mxu0 0.0
    %231 = vmatpush2.msra.mxu0 0.0
    %232 = vmatprep.subr.mxu0 0.0
    %233 = vmatpush2.msra.mxu0 0.0
    %234 = vmatprep.subr.mxu0 0.0
    %235 = vmatpush2.msra.mxu0 0.0
    %236 = vmatprep.subr.mxu0 0.0
    %237 = vmatpush2.msra.mxu0 0.0
    %238 = vmatprep.subr.mxu0 0.0
    %239 = vmatpush2.msra.mxu0 0.0
    %240 = vmatprep.subr.mxu0 0.0
    %241 = vmatpush2.msra.mxu0 0.0
    %242 = vmatprep.subr.mxu0 0.0
    %243 = vmatpush2.msra.mxu0 0.0
    %244 = vmatprep.subr.mxu0 0.0
    %245 = vmatpush2.msra.mxu0 0.0
    %246 = vmatprep.subr.mxu0 0.0
    %247 = vmatpush2.msra.mxu0 0.0
    %248 = vmatprep.subr.mxu0 0.0
    %249 = vmatpush2.msra.mxu0 0.0
    %250 = vmatprep.subr.mxu0 0.0
    %251 = vmatpush2.msra.mxu0 0.0
    %252 = vmatprep.subr.mxu0 0.0
    %253 = vmatpush2.msra.mxu0 0.0
    %254 = vmatprep.mubr.f32.mxu0 0.0
    %255 = vmatmul.mubr.f32.gmra.mxu0 %v188
    %v256 = vpop.f32.mrf.mxu0
    %v257 = vadd.f32 0.0, %v256
    %v258 = vpop.f32.mrf.mxu0
    %259 = vdwg.mxu0
    %vm260 = vcmask 130048
    %v262 = vsel %vm260, %v176, 0
    %264 = vmatprep.subr.mxu0 0.0
    %265 = vmatpush1.msra.mxu0 0.0
    %266 = vmatprep.subr.mxu0 0.0
    %267 = vmatpush1.msra.mxu0 0.0
    %268 = vmatprep.subr.mxu0 0.0
    %269 = vmatpush1.msra.mxu0 0.0
    %270 = vmatprep.subr.mxu0 0.0
    %271 = vmatpush1.msra.mxu0 0.0
    %272 = vmatprep.subr.mxu0 0.0
    %273 = vmatpush1.msra.mxu0 0.0
    %274 = vmatprep.subr.mxu0 0.0
    %275 = vmatpush1.msra.mxu0 0.0
    %276 = vmatprep.subr.mxu0 0.0
    %277 = vmatpush1.msra.mxu0 0.0
    %278 = vmatprep.subr.mxu0 0.0
    %279 = vmatpush1.msra.mxu0 0.0
    %280 = vmatprep.subr.mxu0 0.0
    %281 = vmatpush1.msra.mxu0 0.0
    %282 = vmatprep.subr.mxu0 0.0
    %283 = vmatpush1.msra.mxu0 0.0
    %284 = vmatprep.subr.mxu0 0.0
    %285 = vmatpush1.msra.mxu0 0.0
    %286 = vmatprep.subr.mxu0 0.0
    %287 = vmatpush1.msra.mxu0 0.0
    %288 = vmatprep.subr.mxu0 0.0
    %289 = vmatpush1.msra.mxu0 0.0
    %290 = vmatprep.subr.mxu0 0.0
    %291 = vmatpush1.msra.mxu0 0.0
    %292 = vmatprep.subr.mxu0 0.0
    %293 = vmatpush1.msra.mxu0 %v178
    %294 = vmatprep.subr.mxu0 0.0
    %295 = vmatpush1.msra.mxu0 %v177
    %296 = vmatprep.subr.mxu0 0.0
    %297 = vmatpush2.msra.mxu0 0.0
    %298 = vmatprep.subr.mxu0 0.0
    %299 = vmatpush2.msra.mxu0 0.0
    %300 = vmatprep.subr.mxu0 0.0
    %301 = vmatpush2.msra.mxu0 0.0
    %302 = vmatprep.subr.mxu0 0.0
    %303 = vmatpush2.msra.mxu0 0.0
    %304 = vmatprep.subr.mxu0 0.0
    %305 = vmatpush2.msra.mxu0 0.0
    %306 = vmatprep.subr.mxu0 0.0
    %307 = vmatpush2.msra.mxu0 0.0
    %308 = vmatprep.subr.mxu0 0.0
    %309 = vmatpush2.msra.mxu0 0.0
    %310 = vmatprep.subr.mxu0 0.0
    %311 = vmatpush2.msra.mxu0 0.0
    %312 = vmatprep.subr.mxu0 0.0
    %313 = vmatpush2.msra.mxu0 0.0
    %314 = vmatprep.subr.mxu0 0.0
    %315 = vmatpush2.msra.mxu0 0.0
    %316 = vmatprep.subr.mxu0 0.0
    %317 = vmatpush2.msra.mxu0 0.0
    %318 = vmatprep.subr.mxu0 0.0
    %319 = vmatpush2.msra.mxu0 0.0
    %320 = vmatprep.subr.mxu0 0.0
    %321 = vmatpush2.msra.mxu0 0.0
    %322 = vmatprep.subr.mxu0 0.0
    %323 = vmatpush2.msra.mxu0 0.0
    %324 = vmatprep.subr.mxu0 0.0
    %325 = vmatpush2.msra.mxu0 0.0
    %326 = vmatprep.subr.mxu0 0.0
    %327 = vmatpush2.msra.mxu0 0.0
    %328 = vmatprep.mubr.f32.mxu0 0.0
    %329 = vmatmul.mubr.f32.gmra.mxu0 %v262
    %v330 = vpop.f32.mrf.mxu0
    %v331 = vadd.f32 %v257, %v330
    %v332 = vpop.f32.mrf.mxu0
    %333 = vdwg.mxu0
    %v334 = vlaneseq
    %v335 = vshrl.u32 %v334, 7
    %v336 = vsub.s32 0, %v335
    %v337 = vrot.slane %v183, %v336
    %339 = vrot.lane.b32.xlu0 %v337, 64
    %v340 = vpop.permute.xlu0 %339
    %v342 = vadd.f32 %v331, %v340
    %v343 = vxor.u32 %v342, 2147483648
    %v344 = vmul.f32 %v343, 1.442695
    %v345 = vpow.pop %v344
    %v346 = vadd.f32 %v345, 1.0
    %v347 = vrcp.pop %v346
    %v348 = vmul.f32 1.0, %v347
    %v349 = vmul.f32 %v342, %v348
    %352 = vrot.lane.b32.xlu0 %v177, 96
    %v353 = vpop.permute.xlu0 %352
    %354 = vrot.lane.b32.xlu0 %v178, 96
    %v355 = vpop.permute.xlu0 %354
    %356 = vrot.lane.b32.xlu0 %v337, 32
    %v357 = vpop.permute.xlu0 %356
    %v360 = vsel %vm187, %v349, 0
    %v362 = vsel %vm187, %v353, 0
    %v364 = vsel %vm187, %v355, 0
    %366 = vmatprep.subr.mxu0 0.0
    %367 = vmatpush1.xpose.msra.mxu0 0.0
    %368 = vmatprep.subr.mxu0 0.0
    %369 = vmatpush1.xpose.msra.mxu0 0.0
    %370 = vmatprep.subr.mxu0 0.0
    %371 = vmatpush1.xpose.msra.mxu0 0.0
    %372 = vmatprep.subr.mxu0 0.0
    %373 = vmatpush1.xpose.msra.mxu0 0.0
    %374 = vmatprep.subr.mxu0 0.0
    %375 = vmatpush1.xpose.msra.mxu0 0.0
    %376 = vmatprep.subr.mxu0 0.0
    %377 = vmatpush1.xpose.msra.mxu0 0.0
    %378 = vmatprep.subr.mxu0 0.0
    %379 = vmatpush1.xpose.msra.mxu0 0.0
    %380 = vmatprep.subr.mxu0 0.0
    %381 = vmatpush1.xpose.msra.mxu0 0.0
    %382 = vmatprep.subr.mxu0 0.0
    %383 = vmatpush1.xpose.msra.mxu0 0.0
    %384 = vmatprep.subr.mxu0 0.0
    %385 = vmatpush1.xpose.msra.mxu0 0.0
    %386 = vmatprep.subr.mxu0 0.0
    %387 = vmatpush1.xpose.msra.mxu0 0.0
    %388 = vmatprep.subr.mxu0 0.0
    %389 = vmatpush1.xpose.msra.mxu0 0.0
    %390 = vmatprep.subr.mxu0 0.0
    %391 = vmatpush1.xpose.msra.mxu0 0.0
    %392 = vmatprep.subr.mxu0 0.0
    %393 = vmatpush1.xpose.msra.mxu0 0.0
    %394 = vmatprep.subr.mxu0 0.0
    %395 = vmatpush1.xpose.msra.mxu0 %v364
    %396 = vmatprep.subr.mxu0 0.0
    %397 = vmatpush1.xpose.msra.mxu0 %v362
    %398 = vmatprep.subr.mxu0 0.0
    %399 = vmatpush2.xpose.msra.mxu0 0.0
    %400 = vmatprep.subr.mxu0 0.0
    %401 = vmatpush2.xpose.msra.mxu0 0.0
    %402 = vmatprep.subr.mxu0 0.0
    %403 = vmatpush2.xpose.msra.mxu0 0.0
    %404 = vmatprep.subr.mxu0 0.0
    %405 = vmatpush2.xpose.msra.mxu0 0.0
    %406 = vmatprep.subr.mxu0 0.0
    %407 = vmatpush2.xpose.msra.mxu0 0.0
    %408 = vmatprep.subr.mxu0 0.0
    %409 = vmatpush2.xpose.msra.mxu0 0.0
    %410 = vmatprep.subr.mxu0 0.0
    %411 = vmatpush2.xpose.msra.mxu0 0.0
    %412 = vmatprep.subr.mxu0 0.0
    %413 = vmatpush2.xpose.msra.mxu0 0.0
    %414 = vmatprep.subr.mxu0 0.0
    %415 = vmatpush2.xpose.msra.mxu0 0.0
    %416 = vmatprep.subr.mxu0 0.0
    %417 = vmatpush2.xpose.msra.mxu0 0.0
    %418 = vmatprep.subr.mxu0 0.0
    %419 = vmatpush2.xpose.msra.mxu0 0.0
    %420 = vmatprep.subr.mxu0 0.0
    %421 = vmatpush2.xpose.msra.mxu0 0.0
    %422 = vmatprep.subr.mxu0 0.0
    %423 = vmatpush2.xpose.msra.mxu0 0.0
    %424 = vmatprep.subr.mxu0 0.0
    %425 = vmatpush2.xpose.msra.mxu0 0.0
    %426 = vmatprep.subr.mxu0 0.0
    %427 = vmatpush2.xpose.msra.mxu0 0.0
    %428 = vmatprep.subr.mxu0 0.0
    %429 = vmatpush2.xpose.msra.mxu0 0.0
    %430 = vmatprep.mubr.f32.mxu0 0.0
    %431 = vmatmul.mubr.f32.gmra.mxu0 %v360
    %v432 = vpop.f32.mrf.mxu0
    %v433 = vadd.f32 %v357, %v432
    %v434 = vpop.f32.mrf.mxu0
    %435 = vdwg.mxu0
    %s436 = sld [smem:[#allocation7]]
    %v437 = vld [vmem:[#allocation2] sm:$0xff]
    %v438 = vsub.f32 %v433, %v437
    %v439 = vand.u32 2147483647, %v438
    %v440 = vsel %vm260, %v439, 0.0
    %441 = vadd.xlane.f32.xlu0 %v440
    %v442 = vpop.xlane.xlu0 %441
    %v443 = vrot.slane %v442, 4
    %v444 = vadd.f32 %v442, %v443
    %v445 = vrot.slane %v444, 2
    %v446 = vadd.f32 %v444, %v445
    %v447 = vrot.slane %v446, 1
    %v448 = vadd.f32 %v446, %v447
    %s449 = vtos %v448
    %s450 = smul.f32 %s449, 0.0078125
    %s451 = sadd.f32 %s436, %s450
    %s452 = scalar_lea.smem [#allocation7], 0
    %453 = sst [smem:[%s452]] %s451
    // Predicated region
    $region30: #{ddim_model_forward.1} parent=1 // pred_check
      _
    $region31: #{ddim_model_forward.1} parent=1 // pred_check_branch
      %455 = sbr.rel (0) target = $region33
    $region32: #{ddim_model_forward.1} parent=1 // pred_region
      %s457 = ssub.s32 16, 16
      %458 = vsyncadd [#allocation4], %s457
      %461 = dma.smem_to_hbm [#allocation7], 16, %s4, [#allocation4]
    $region33: #{ddim_model_forward.1} parent=1 // pred_fallthru
      _
    // Predicated region
    $region34: #{ddim_model_forward.1} parent=1 // pred_check
      _
    $region35: #{ddim_model_forward.1} parent=1 // pred_check_branch
      %463 = sbr.rel (0) target = $region37
    $region36: #{ddim_model_forward.1} parent=1 // pred_region
      %464 = dma.done [#allocation4], 16
    $region37: #{ddim_model_forward.1} parent=1 // pred_fallthru
      _
    %465 = sfence
    %466 = vsyncpa [#allocation3], 1
    %467 = vsyncpa [#allocation6], 1
    %468 = vsyncpa [#allocation4], 1

</llo_original>
